<compile_context>
chip_gen: v7x
topology: tpu7x:2x2x1
jax: 0.10.0
libtpu: 0.0.40
codegen_flags: <defaults>
</compile_context>

<pallas_src>
import functools

import jax
import jax.numpy as jnp
from jax.experimental import pallas as pl
from jax.experimental.pallas import tpu as pltpu

BN_EPS = 1e-5


# ----------------------------------------------------------------------------
# Fused Pallas kernel: sufficient statistics in the hot loop, all W/bias/BN
# algebra + batch-0 mean pool in the finalize step.
# ----------------------------------------------------------------------------
def _encoder_kernel(x_ref, w_ref, bias_ref, gamma_ref, beta_ref, o_ref,
                    sx_ref, b0sx_ref, gram_ref, *, batch, n_points):
    b = pl.program_id(0)      # batch index
    t = pl.program_id(1)      # point-tile index

    @pl.when((b == 0) & (t == 0))
    def _init():
        sx_ref[...] = jnp.zeros_like(sx_ref)
        b0sx_ref[...] = jnp.zeros_like(b0sx_ref)
        gram_ref[...] = jnp.zeros_like(gram_ref)

    # Hot loop: only sufficient statistics of x. No y materialization.
    x = x_ref[...]                                            # (C, tile_n) f32
    sx_tile = jnp.sum(x, axis=1, keepdims=True)               # (C, 1)  XLU reduce
    sx_ref[...] += sx_tile
    # Gram = X X^T via MXU (contraction over the point/lane axis of both operands).
    gram_ref[...] += jax.lax.dot_general(
        x, x, dimension_numbers=(((1,), (1,)), ((), ())),
        preferred_element_type=jnp.float32)                   # (C, C)

    # torch.mean(y, 2)[0] only needs batch 0; mean pooling commutes with the
    # per-channel affine chain, so the batch-0 per-channel x-sum is enough.
    @pl.when(b == 0)
    def _batch0():
        b0sx_ref[...] += sx_tile

    @pl.when((b == pl.num_programs(0) - 1) & (t == pl.num_programs(1) - 1))
    def _finalize():
        w = w_ref[...]                                        # (C, Cout) f32
        bias = bias_ref[...]                                  # (1, Cout) f32
        n_tot = float(batch * n_points)                       # static constants
        inv_n_tot = 1.0 / n_tot
        inv_n_pts = 1.0 / float(n_points)

        # sum_n y_o  and  sum_n y_o^2  from the sufficient statistics.
        sxw = jnp.sum(sx_ref[...] * w, axis=0, keepdims=True)          # sx^T W
        gw = jnp.dot(gram_ref[...], w, preferred_element_type=jnp.float32)
        wgw = jnp.sum(w * gw, axis=0, keepdims=True)                   # diag(W^T G W)

        mean = sxw * inv_n_tot + bias
        sum_sq = wgw + 2.0 * bias * sxw + n_tot * bias * bias
        var = jnp.maximum(sum_sq * inv_n_tot - mean * mean, 0.0)
        inv_std = jax.lax.rsqrt(var + BN_EPS)

        # Batch-0 pooled pre-BN mean, then the BN affine applied once.
        b0_mean = jnp.sum(b0sx_ref[...] * w, axis=0, keepdims=True) * inv_n_pts + bias
        o_ref[...] = (b0_mean - mean) * inv_std * gamma_ref[...] + beta_ref[...]


# ----------------------------------------------------------------------------
# Wrapper
# ----------------------------------------------------------------------------
def pointnet_encoder_forward(x, params, *, tile_n=None):
    """PointNetEncoder.forward. x: (B, C, N) float32. Returns (feat, trans_feat)."""
    bsz, c_in, n_points = x.shape
    c_out = params["conv2_w"].shape[1]
    if tile_n is None:
        tile_n = min(n_points, 8192)          # big tiles amortize grid overhead
    assert n_points % tile_n == 0, "TODO(synk): pad N to a multiple of tile_n"
    # Lane (minor) dim of the x block must be a multiple of 128 unless it is the
    # full N extent.
    assert tile_n == n_points or tile_n % 128 == 0

    w = params["conv2_w"].astype(jnp.float32)                       # (C, Cout)
    bias = params["conv2_b"].reshape(1, c_out).astype(jnp.float32)
    gamma = params["bn2_g"].reshape(1, c_out).astype(jnp.float32)
    beta = params["bn2_b"].reshape(1, c_out).astype(jnp.float32)

    kern = functools.partial(_encoder_kernel, batch=bsz, n_points=n_points)

    cost = pl.CostEstimate(
        flops=2 * bsz * n_points * c_in * c_in + 2 * c_in * c_in * c_out,
        transcendentals=0,
        bytes_accessed=bsz * c_in * n_points * 4 + (c_in + 3) * c_out * 4 + c_out * 4,
    )

    feat = pl.pallas_call(
        kern,
        out_shape=jax.ShapeDtypeStruct((1, c_out), jnp.float32),
        grid_spec=pltpu.PrefetchScalarGridSpec(
            num_scalar_prefetch=0,
            grid=(bsz, n_points // tile_n),
            in_specs=[
                # Native channel-first layout; Squeezed batch dim -> 2-D kernel Ref.
                pl.BlockSpec((pl.Squeezed(), c_in, tile_n), lambda b, t: (b, 0, t)),
                pl.BlockSpec((c_in, c_out), lambda b, t: (0, 0)),
                pl.BlockSpec((1, c_out), lambda b, t: (0, 0)),
                pl.BlockSpec((1, c_out), lambda b, t: (0, 0)),
                pl.BlockSpec((1, c_out), lambda b, t: (0, 0)),
            ],
            out_specs=pl.BlockSpec((1, c_out), lambda b, t: (0, 0)),
            scratch_shapes=[
                pltpu.VMEM((c_in, 1), jnp.float32),     # sum x   (all batches)
                pltpu.VMEM((c_in, 1), jnp.float32),     # sum x   (batch 0)
                pltpu.VMEM((c_in, c_in), jnp.float32),  # Gram X X^T
            ],
        ),
        compiler_params=pltpu.CompilerParams(
            # Both grid axes feed shared accumulators -> sequential reduction axes.
            dimension_semantics=("arbitrary", "arbitrary"),
        ),
        cost_estimate=cost,
    )(x.astype(jnp.float32), w, bias, gamma, beta)

    return feat, None   # trans_feat is None when feature_transform=False


# ----------------------------------------------------------------------------
# Pure-JAX reference (literal PyTorch semantics, f32 end-to-end)
# ----------------------------------------------------------------------------
def reference_forward(x, params):
    w = params["conv2_w"]                                             # (C, Cout)
    y = jnp.einsum("bcn,co->bon", x, w) + params["conv2_b"][None, :, None]
    mean = jnp.mean(y, axis=(0, 2), keepdims=True)                    # training-mode BN
    var = jnp.mean((y - mean) ** 2, axis=(0, 2), keepdims=True)
    y = (y - mean) * jax.lax.rsqrt(var + BN_EPS) * params["bn2_g"][None, :, None] \
        + params["bn2_b"][None, :, None]
    pooled = jnp.mean(y, axis=2, keepdims=True)                       # (B, Cout, 1)
    return pooled[0].reshape(-1, y.shape[1])                          # torch.mean(...)[0].view(-1, Cout)


# ----------------------------------------------------------------------------
# Deterministic parameter init (shapes follow PointNetEncoder.__init__)
# ----------------------------------------------------------------------------
def init_params(key, channel=3, c_out=256):
    k1, k2, k3, k4 = jax.random.split(key, 4)
    return {
        "conv2_w": 0.1 * jax.random.normal(k1, (channel, c_out), jnp.float32),
        "conv2_b": 0.1 * jax.random.normal(k2, (c_out,), jnp.float32),
        "bn2_g": 1.0 + 0.1 * jax.random.normal(k3, (c_out,), jnp.float32),
        "bn2_b": 0.1 * jax.random.normal(k4, (c_out,), jnp.float32),
    }


# ----------------------------------------------------------------------------
if __name__ == "__main__":
    key = jax.random.PRNGKey(0)
    B, CHANNEL, N = 2, 3, 256          # small demo shapes (Conv1d input: B, C, N)

    kx, kp = jax.random.split(key)
    x = jax.random.normal(kx, (B, CHANNEL, N), jnp.float32)
    params = init_params(kp, channel=CHANNEL)

    fwd = jax.jit(pointnet_encoder_forward)
    feat, trans_feat = fwd(x, params)
    feat = jax.block_until_ready(feat)

    assert feat.shape == (1, 256)
    assert trans_feat is None
    assert bool(jnp.all(jnp.isfinite(feat)))

    ref = reference_forward(x, params)
    err = float(jnp.max(jnp.abs(feat - ref)))
    assert err < 1e-2, f"max abs error vs reference: {err}"

    print("KERNEL_OK")
</pallas_src>

<mosaic_0001>
module attributes {stable_mosaic.version = 11 : i64} {
  func.func @_encoder_kernel(%arg0: i32, %arg1: i32, %arg2: memref<1x3x256xf32, #tpu.memory_space<vmem>>, %arg3: memref<3x256xf32, #tpu.memory_space<vmem>>, %arg4: memref<1x256xf32, #tpu.memory_space<vmem>>, %arg5: memref<1x256xf32, #tpu.memory_space<vmem>>, %arg6: memref<1x256xf32, #tpu.memory_space<vmem>>, %arg7: memref<1x256xf32, #tpu.memory_space<vmem>>, %arg8: memref<3x1xf32, #tpu.memory_space<vmem>>, %arg9: memref<3x1xf32, #tpu.memory_space<vmem>>, %arg10: memref<3x3xf32, #tpu.memory_space<vmem>>) attributes {dimension_semantics = [#tpu.dimension_semantics<arbitrary>, #tpu.dimension_semantics<arbitrary>], iteration_bounds = array<i64: 2, 1>, scalar_prefetch = 0 : i64, scratch_operands = 3 : i64, tpu.core_type = #tpu.core_type<tc>, window_params = [{transform_indices = @transform_0, window_bounds = array<i64: 1, 3, 256>}, {pipeline_mode = #tpu.pipeline_mode<synchronous>, transform_indices = @transform_1, window_bounds = array<i64: 3, 256>}, {pipeline_mode = #tpu.pipeline_mode<synchronous>, transform_indices = @transform_2, window_bounds = array<i64: 1, 256>}, {pipeline_mode = #tpu.pipeline_mode<synchronous>, transform_indices = @transform_3, window_bounds = array<i64: 1, 256>}, {pipeline_mode = #tpu.pipeline_mode<synchronous>, transform_indices = @transform_4, window_bounds = array<i64: 1, 256>}, {pipeline_mode = #tpu.pipeline_mode<synchronous>, transform_indices = @transform_5, window_bounds = array<i64: 1, 256>}]} {
    %c0_i32 = arith.constant 0 : i32
    %0 = arith.cmpi eq, %arg0, %c0_i32 : i32
    %c0_i32_0 = arith.constant 0 : i32
    %1 = arith.cmpi eq, %arg1, %c0_i32_0 : i32
    %2 = arith.andi %0, %1 : i1
    %3 = arith.extui %2 : i1 to i32
    %c0_i32_1 = arith.constant 0 : i32
    %4 = arith.cmpi ne, %3, %c0_i32_1 : i32
    scf.if %4 {
      %cst_17 = arith.constant 0.000000e+00 : f32
      %24 = vector.broadcast %cst_17 : f32 to vector<3x1xf32>
      %c0_18 = arith.constant 0 : index
      %c0_19 = arith.constant 0 : index
      %25 = vector.load %arg8[%c0_18, %c0_19] : memref<3x1xf32, #tpu.memory_space<vmem>>, vector<3x1xf32>
      tpu.vector_store %arg8[%c0_18, %c0_19], %24 {strides = array<i32>} : memref<3x1xf32, #tpu.memory_space<vmem>>, vector<3x1xf32>,
      %cst_20 = arith.constant 0.000000e+00 : f32
      %26 = vector.broadcast %cst_20 : f32 to vector<3x1xf32>
      %c0_21 = arith.constant 0 : index
      %c0_22 = arith.constant 0 : index
      %27 = vector.load %arg9[%c0_21, %c0_22] : memref<3x1xf32, #tpu.memory_space<vmem>>, vector<3x1xf32>
      tpu.vector_store %arg9[%c0_21, %c0_22], %26 {strides = array<i32>} : memref<3x1xf32, #tpu.memory_space<vmem>>, vector<3x1xf32>,
      %cst_23 = arith.constant 0.000000e+00 : f32
      %28 = vector.broadcast %cst_23 : f32 to vector<3x3xf32>
      %c0_24 = arith.constant 0 : index
      %c0_25 = arith.constant 0 : index
      %29 = vector.load %arg10[%c0_24, %c0_25] : memref<3x3xf32, #tpu.memory_space<vmem>>, vector<3x3xf32>
      tpu.vector_store %arg10[%c0_24, %c0_25], %28 {strides = array<i32>} : memref<3x3xf32, #tpu.memory_space<vmem>>, vector<3x3xf32>,
    } else {
    }
    %c0 = arith.constant 0 : index
    %c0_2 = arith.constant 0 : index
    %c0_3 = arith.constant 0 : index
    %5 = vector.load %arg2[%c0, %c0_2, %c0_3] : memref<1x3x256xf32, #tpu.memory_space<vmem>>, vector<1x3x256xf32>
    %6 = vector.shape_cast %5 : vector<1x3x256xf32> to vector<3x256xf32>
    %cst = arith.constant dense<0.000000e+00> : vector<3xf32>
    %7 = vector.multi_reduction <add>, %6, %cst [1] : vector<3x256xf32> to vector<3xf32>
    %8 = vector.shape_cast %7 : vector<3xf32> to vector<3x1xf32>
    %c0_4 = arith.constant 0 : index
    %c0_5 = arith.constant 0 : index
    %9 = vector.load %arg8[%c0_4, %c0_5] : memref<3x1xf32, #tpu.memory_space<vmem>>, vector<3x1xf32>
    %10 = arith.addf %9, %8 : vector<3x1xf32>
    %c0_6 = arith.constant 0 : index
    %c0_7 = arith.constant 0 : index
    %11 = vector.load %arg8[%c0_6, %c0_7] : memref<3x1xf32, #tpu.memory_space<vmem>>, vector<3x1xf32>
    tpu.vector_store %arg8[%c0_6, %c0_7], %10 {strides = array<i32>} : memref<3x1xf32, #tpu.memory_space<vmem>>, vector<3x1xf32>,
    %c0_8 = arith.constant 0 : index
    %c0_9 = arith.constant 0 : index
    %12 = vector.load %arg10[%c0_8, %c0_9] : memref<3x3xf32, #tpu.memory_space<vmem>>, vector<3x3xf32>
    %cst_10 = arith.constant dense<0.000000e+00> : vector<3x3xf32>
    %13 = tpu.matmul %6, %6, %cst_10 {dimension_numbers = #tpu.dot_dimension_numbers<[1], [1], [0], [0], [0, 0, 1, 0], [], []>} : vector<3x256xf32>, vector<3x256xf32>, vector<3x3xf32> -> vector<3x3xf32>
    %14 = arith.addf %12, %13 : vector<3x3xf32>
    %c0_11 = arith.constant 0 : index
    %c0_12 = arith.constant 0 : index
    %15 = vector.load %arg10[%c0_11, %c0_12] : memref<3x3xf32, #tpu.memory_space<vmem>>, vector<3x3xf32>
    tpu.vector_store %arg10[%c0_11, %c0_12], %14 {strides = array<i32>} : memref<3x3xf32, #tpu.memory_space<vmem>>, vector<3x3xf32>,
    %c0_i32_13 = arith.constant 0 : i32
    %16 = arith.cmpi eq, %arg0, %c0_i32_13 : i32
    %17 = arith.extui %16 : i1 to i32
    %c0_i32_14 = arith.constant 0 : i32
    %18 = arith.cmpi ne, %17, %c0_i32_14 : i32
    scf.if %18 {
      %c0_17 = arith.constant 0 : index
      %c0_18 = arith.constant 0 : index
      %24 = vector.load %arg9[%c0_17, %c0_18] : memref<3x1xf32, #tpu.memory_space<vmem>>, vector<3x1xf32>
      %25 = arith.addf %24, %8 : vector<3x1xf32>
      %c0_19 = arith.constant 0 : index
      %c0_20 = arith.constant 0 : index
      %26 = vector.load %arg9[%c0_19, %c0_20] : memref<3x1xf32, #tpu.memory_space<vmem>>, vector<3x1xf32>
      tpu.vector_store %arg9[%c0_19, %c0_20], %25 {strides = array<i32>} : memref<3x1xf32, #tpu.memory_space<vmem>>, vector<3x1xf32>,
    } else {
    }
    %c1_i32 = arith.constant 1 : i32
    %19 = arith.cmpi eq, %arg0, %c1_i32 : i32
    %c0_i32_15 = arith.constant 0 : i32
    %20 = arith.cmpi eq, %arg1, %c0_i32_15 : i32
    %21 = arith.andi %19, %20 : i1
    %22 = arith.extui %21 : i1 to i32
    %c0_i32_16 = arith.constant 0 : i32
    %23 = arith.cmpi ne, %22, %c0_i32_16 : i32
    scf.if %23 {
      %c0_17 = arith.constant 0 : index
      %c0_18 = arith.constant 0 : index
      %24 = vector.load %arg3[%c0_17, %c0_18] : memref<3x256xf32, #tpu.memory_space<vmem>>, vector<3x256xf32>
      %c0_19 = arith.constant 0 : index
      %c0_20 = arith.constant 0 : index
      %25 = vector.load %arg4[%c0_19, %c0_20] : memref<1x256xf32, #tpu.memory_space<vmem>>, vector<1x256xf32>
      %c0_21 = arith.constant 0 : index
      %c0_22 = arith.constant 0 : index
      %26 = vector.load %arg8[%c0_21, %c0_22] : memref<3x1xf32, #tpu.memory_space<vmem>>, vector<3x1xf32>
      %27 = vector.broadcast %26 : vector<3x1xf32> to vector<3x256xf32>
      %28 = arith.mulf %27, %24 : vector<3x256xf32>
      %cst_23 = arith.constant dense<0.000000e+00> : vector<256xf32>
      %29 = vector.multi_reduction <add>, %28, %cst_23 [0] : vector<3x256xf32> to vector<256xf32>
      %30 = vector.shape_cast %29 : vector<256xf32> to vector<1x256xf32>
      %c0_24 = arith.constant 0 : index
      %c0_25 = arith.constant 0 : index
      %31 = vector.load %arg10[%c0_24, %c0_25] : memref<3x3xf32, #tpu.memory_space<vmem>>, vector<3x3xf32>
      %cst_26 = arith.constant dense<0.000000e+00> : vector<3x256xf32>
      %32 = tpu.matmul %31, %24, %cst_26 {dimension_numbers = #tpu.dot_dimension_numbers<[1], [0], [0], [1], [0, 0, 1, 1], [], []>} : vector<3x3xf32>, vector<3x256xf32>, vector<3x256xf32> -> vector<3x256xf32>
      %33 = arith.mulf %24, %32 : vector<3x256xf32>
      %cst_27 = arith.constant dense<0.000000e+00> : vector<256xf32>
      %34 = vector.multi_reduction <add>, %33, %cst_27 [0] : vector<3x256xf32> to vector<256xf32>
      %35 = vector.shape_cast %34 : vector<256xf32> to vector<1x256xf32>
      %cst_28 = arith.constant 0.001953125 : f32
      %36 = vector.broadcast %cst_28 : f32 to vector<1x256xf32>
      %37 = arith.mulf %30, %36 : vector<1x256xf32>
      %38 = arith.addf %37, %25 : vector<1x256xf32>
      %cst_29 = arith.constant 2.000000e+00 : f32
      %39 = vector.broadcast %cst_29 : f32 to vector<1x256xf32>
      %40 = arith.mulf %39, %25 : vector<1x256xf32>
      %41 = arith.mulf %40, %30 : vector<1x256xf32>
      %42 = arith.addf %35, %41 : vector<1x256xf32>
      %cst_30 = arith.constant 5.120000e+02 : f32
      %43 = vector.broadcast %cst_30 : f32 to vector<1x256xf32>
      %44 = arith.mulf %43, %25 : vector<1x256xf32>
      %45 = arith.mulf %44, %25 : vector<1x256xf32>
      %46 = arith.addf %42, %45 : vector<1x256xf32>
      %cst_31 = arith.constant 0.001953125 : f32
      %47 = vector.broadcast %cst_31 : f32 to vector<1x256xf32>
      %48 = arith.mulf %46, %47 : vector<1x256xf32>
      %49 = arith.mulf %38, %38 : vector<1x256xf32>
      %50 = arith.subf %48, %49 : vector<1x256xf32>
      %cst_32 = arith.constant 0.000000e+00 : f32
      %51 = vector.broadcast %cst_32 : f32 to vector<1x256xf32>
      %52 = arith.maximumf %50, %51 : vector<1x256xf32>
      %cst_33 = arith.constant 9.99999974E-6 : f32
      %53 = vector.broadcast %cst_33 : f32 to vector<1x256xf32>
      %54 = arith.addf %52, %53 : vector<1x256xf32>
      %55 = math.rsqrt %54 : vector<1x256xf32>
      %c0_34 = arith.constant 0 : index
      %c0_35 = arith.constant 0 : index
      %56 = vector.load %arg9[%c0_34, %c0_35] : memref<3x1xf32, #tpu.memory_space<vmem>>, vector<3x1xf32>
      %57 = vector.broadcast %56 : vector<3x1xf32> to vector<3x256xf32>
      %58 = arith.mulf %57, %24 : vector<3x256xf32>
      %cst_36 = arith.constant dense<0.000000e+00> : vector<256xf32>
      %59 = vector.multi_reduction <add>, %58, %cst_36 [0] : vector<3x256xf32> to vector<256xf32>
      %60 = vector.shape_cast %59 : vector<256xf32> to vector<1x256xf32>
      %cst_37 = arith.constant 3.906250e-03 : f32
      %61 = vector.broadcast %cst_37 : f32 to vector<1x256xf32>
      %62 = arith.mulf %60, %61 : vector<1x256xf32>
      %63 = arith.addf %62, %25 : vector<1x256xf32>
      %64 = arith.subf %63, %38 : vector<1x256xf32>
      %65 = arith.mulf %64, %55 : vector<1x256xf32>
      %c0_38 = arith.constant 0 : index
      %c0_39 = arith.constant 0 : index
      %66 = vector.load %arg5[%c0_38, %c0_39] : memref<1x256xf32, #tpu.memory_space<vmem>>, vector<1x256xf32>
      %67 = arith.mulf %65, %66 : vector<1x256xf32>
      %c0_40 = arith.constant 0 : index
      %c0_41 = arith.constant 0 : index
      %68 = vector.load %arg6[%c0_40, %c0_41] : memref<1x256xf32, #tpu.memory_space<vmem>>, vector<1x256xf32>
      %69 = arith.addf %67, %68 : vector<1x256xf32>
      %c0_42 = arith.constant 0 : index
      %c0_43 = arith.constant 0 : index
      %70 = vector.load %arg7[%c0_42, %c0_43] : memref<1x256xf32, #tpu.memory_space<vmem>>, vector<1x256xf32>
      tpu.vector_store %arg7[%c0_42, %c0_43], %69 {strides = array<i32>} : memref<1x256xf32, #tpu.memory_space<vmem>>, vector<1x256xf32>,
    } else {
    }
    return
  }
  func.func @transform_0(%arg0: i32, %arg1: i32) -> (i32, i32, i32) {
    %c0_i32 = arith.constant 0 : i32
    %c0_i32_0 = arith.constant 0 : i32
    return %arg0, %c0_i32, %arg1 : i32, i32, i32
  }
  func.func @transform_1(%arg0: i32, %arg1: i32) -> (i32, i32) {
    %c0_i32 = arith.constant 0 : i32
    %c0_i32_0 = arith.constant 0 : i32
    %c0_i32_1 = arith.constant 0 : i32
    return %c0_i32, %c0_i32_0 : i32, i32
  }
  func.func @transform_2(%arg0: i32, %arg1: i32) -> (i32, i32) {
    %c0_i32 = arith.constant 0 : i32
    %c0_i32_0 = arith.constant 0 : i32
    %c0_i32_1 = arith.constant 0 : i32
    return %c0_i32, %c0_i32_0 : i32, i32
  }
  func.func @transform_3(%arg0: i32, %arg1: i32) -> (i32, i32) {
    %c0_i32 = arith.constant 0 : i32
    %c0_i32_0 = arith.constant 0 : i32
    %c0_i32_1 = arith.constant 0 : i32
    return %c0_i32, %c0_i32_0 : i32, i32
  }
  func.func @transform_4(%arg0: i32, %arg1: i32) -> (i32, i32) {
    %c0_i32 = arith.constant 0 : i32
    %c0_i32_0 = arith.constant 0 : i32
    %c0_i32_1 = arith.constant 0 : i32
    return %c0_i32, %c0_i32_0 : i32, i32
  }
  func.func @transform_5(%arg0: i32, %arg1: i32) -> (i32, i32) {
    %c0_i32 = arith.constant 0 : i32
    %c0_i32_0 = arith.constant 0 : i32
    %c0_i32_1 = arith.constant 0 : i32
    return %c0_i32, %c0_i32_0 : i32, i32
  }
}

</mosaic_0001>

<llo_original>
// kernel: pointnet_encoder_forward.1
$region0: #{pointnet_encoder_forward.1}
  #allocation0 [shape = 'u32[]', space=smem, size = 0x4, offset = 0x4, fixed_abs, tag = 'smem constant byte address 0x4 - core index']
  #allocation1 [shape = 'u32[144,128]{1,0:T(1,128)}', space=vmem, size = 0x12000, scoped, tag = 'internal scratch']
  #allocation2 [shape = 'f32[3,1]{1,0:T(4,128)}', space=vmem, size = 0x800, scoped, tag = 'scratch operand']
  #allocation3 [shape = 'f32[3,1]{1,0:T(4,128)}', space=vmem, size = 0x800, scoped, tag = 'scratch operand']
  #allocation4 [shape = 'f32[3,3]{1,0:T(4,128)}', space=vmem, size = 0x800, scoped, tag = 'scratch operand']
  %s0 = inlined_call_operand.vmem [shape: f32[2,3,256], index: 0, kind: input, shape index: {}]
  %s1 = inlined_call_operand.vmem [shape: f32[3,256], index: 1, kind: input, shape index: {}]
  %s2 = inlined_call_operand.vmem [shape: f32[1,256], index: 2, kind: input, shape index: {}]
  %s3 = inlined_call_operand.vmem [shape: f32[1,256], index: 3, kind: input, shape index: {}]
  %s4 = inlined_call_operand.vmem [shape: f32[1,256], index: 4, kind: input, shape index: {}]
  %s5 = inlined_call_operand.hbm [shape: f32[1,256], index: 5, kind: output, shape index: {}]
  %s6 = sld [smem:[#allocation0]]
  $region65: #{pointnet_encoder_forward.1} parent=0
    _
  %s8 = ssub.s32 1, %s6
  %s9 = scalar_select 0, %s8, %s6
  $region1: #{pointnet_encoder_forward.1} parent=0
    #allocation5 [shape = 'u8[1024]{0}', space=vmem, size = 0x400, scoped, tag = 'output window, operand 0, single buffered']
    #allocation6 [shape = 's32[2]{0}', space=sflag, size = 0x8, scoped, tag = 'scoped memory for pointnet_encoder_forward.1']
    %10 = vsyncpa [#allocation6], 0
    loop: start=0, step=1, limit=4
    $region2: #{pointnet_encoder_forward.1} parent=1 // loop_pre_header
      _
    $region3: #{pointnet_encoder_forward.1} parent=1 // loop_header
      %s12 = sphi 0, %s16
      %p13 = scmp.ge.s32.totalorder %s12, 4
      %s19 = sphi 0, %s31
      %s20 = sphi 0, %s27
      %s21 = sphi 0, %s19
      %s22 = sphi 0, %s20
      %s23 = sphi 0, %s21
      %s24 = sphi 0, %s22
      %s36 = sphi 0, %s38
      %s39 = sphi 0, %s36
      %s40 = sphi 0, %s39
      %s56 = sphi 0, %s40
      %s60 = sphi 0, %s60
      %s62 = sphi 0, %s60
      %s63 = sphi 0, %s62
      %s77 = sphi 0, %s63
      %s81 = sphi 0, %s81
      %s83 = sphi 0, %s81
      %s84 = sphi 0, %s83
      %s98 = sphi 0, %s84
      %s102 = sphi 0, %s102
      %s104 = sphi 0, %s102
      %s105 = sphi 0, %s104
      %s119 = sphi 0, %s105
      %s123 = sphi 0, %s123
      %s125 = sphi 0, %s123
      %s126 = sphi 0, %s125
      %s140 = sphi 0, %s126
      %s144 = sphi 0, %s144
      %s146 = sphi 0, %s144
      %s147 = sphi 0, %s146
      %s161 = sphi 0, %s147
    $region4: #{pointnet_encoder_forward.1} parent=1 // loop_header_branch
      %15 = sbr.rel (%p13) target = $region8
    $region5: #{pointnet_encoder_forward.1} parent=1 // loop_body
      %s17 = ssub.s32 %s12, 1
      %s18 = ssub.s32 %s12, 2
      %s25 = sadd.s32 1, %s20
      %p26 = scmp.ge.s32.totalorder %s25, 1
      %s27 = scalar_select %p26, 0, %s25
      %s28 = sadd.s32 1, %s19
      %s29 = scalar_select %p26, %s28, %s19
      %p30 = scmp.ge.s32.totalorder %s29, 2
      %s31 = scalar_select %p30, 0, %s29
      %s32 = ssub.s32 %s19, %s31
      %s33 = ssub.s32 %s20, %s27
      %s34 = sor.u32 %s32, %s33
      %p35 = scmp.eq.s32.totalorder %s34, 0
      %s37 = sadd.s32 %s36, 1
      %s38 = scalar_select %p35, %s36, %s37
      %p41 = pneg %p35
      %p42 = scmp.eq.s32.totalorder %s12, 1
      %p43 = por %p41, %p42
      %p44 = scmp.ne.s32.totalorder %s36, %s39
      %p45 = scmp.eq.s32.totalorder %s12, 0
      %p46 = por %p44, %p45
      %p47 = scmp.ne.s32.totalorder %s36, %s39
      %p48 = scmp.eq.s32.totalorder %s17, 1
      %p49 = por %p47, %p48
      %p50 = scmp.ne.s32.totalorder %s39, %s40
      %p51 = scmp.eq.s32.totalorder %s17, 0
      %p52 = por %p50, %p51
      %p53 = scmp.ne.s32.totalorder %s39, %s40
      %p54 = scmp.eq.s32.totalorder %s18, 1
      %p55 = por %p53, %p54
      %p57 = scmp.ne.s32.totalorder %s40, %s56
      %p58 = scmp.eq.s32.totalorder %s18, 0
      %p59 = por %p57, %p58
      %s61 = sadd.s32 %s60, 1
      %p64 = scmp.eq.s32.totalorder %s12, 1
      %p65 = scmp.ne.s32.totalorder %s60, %s62
      %p66 = scmp.eq.s32.totalorder %s12, 0
      %p67 = por %p65, %p66
      %p68 = scmp.ne.s32.totalorder %s60, %s62
      %p69 = scmp.eq.s32.totalorder %s17, 1
      %p70 = por %p68, %p69
      %p71 = scmp.ne.s32.totalorder %s62, %s63
      %p72 = scmp.eq.s32.totalorder %s17, 0
      %p73 = por %p71, %p72
      %p74 = scmp.ne.s32.totalorder %s62, %s63
      %p75 = scmp.eq.s32.totalorder %s18, 1
      %p76 = por %p74, %p75
      %p78 = scmp.ne.s32.totalorder %s63, %s77
      %p79 = scmp.eq.s32.totalorder %s18, 0
      %p80 = por %p78, %p79
      %s82 = sadd.s32 %s81, 1
      %p85 = scmp.eq.s32.totalorder %s12, 1
      %p86 = scmp.ne.s32.totalorder %s81, %s83
      %p87 = scmp.eq.s32.totalorder %s12, 0
      %p88 = por %p86, %p87
      %p89 = scmp.ne.s32.totalorder %s81, %s83
      %p90 = scmp.eq.s32.totalorder %s17, 1
      %p91 = por %p89, %p90
      %p92 = scmp.ne.s32.totalorder %s83, %s84
      %p93 = scmp.eq.s32.totalorder %s17, 0
      %p94 = por %p92, %p93
      %p95 = scmp.ne.s32.totalorder %s83, %s84
      %p96 = scmp.eq.s32.totalorder %s18, 1
      %p97 = por %p95, %p96
      %p99 = scmp.ne.s32.totalorder %s84, %s98
      %p100 = scmp.eq.s32.totalorder %s18, 0
      %p101 = por %p99, %p100
      %s103 = sadd.s32 %s102, 1
      %p106 = scmp.eq.s32.totalorder %s12, 1
      %p107 = scmp.ne.s32.totalorder %s102, %s104
      %p108 = scmp.eq.s32.totalorder %s12, 0
      %p109 = por %p107, %p108
      %p110 = scmp.ne.s32.totalorder %s102, %s104
      %p111 = scmp.eq.s32.totalorder %s17, 1
      %p112 = por %p110, %p111
      %p113 = scmp.ne.s32.totalorder %s104, %s105
      %p114 = scmp.eq.s32.totalorder %s17, 0
      %p115 = por %p113, %p114
      %p116 = scmp.ne.s32.totalorder %s104, %s105
      %p117 = scmp.eq.s32.totalorder %s18, 1
      %p118 = por %p116, %p117
      %p120 = scmp.ne.s32.totalorder %s105, %s119
      %p121 = scmp.eq.s32.totalorder %s18, 0
      %p122 = por %p120, %p121
      %s124 = sadd.s32 %s123, 1
      %p127 = scmp.eq.s32.totalorder %s12, 1
      %p128 = scmp.ne.s32.totalorder %s123, %s125
      %p129 = scmp.eq.s32.totalorder %s12, 0
      %p130 = por %p128, %p129
      %p131 = scmp.ne.s32.totalorder %s123, %s125
      %p132 = scmp.eq.s32.totalorder %s17, 1
      %p133 = por %p131, %p132
      %p134 = scmp.ne.s32.totalorder %s125, %s126
      %p135 = scmp.eq.s32.totalorder %s17, 0
      %p136 = por %p134, %p135
      %p137 = scmp.ne.s32.totalorder %s125, %s126
      %p138 = scmp.eq.s32.totalorder %s18, 1
      %p139 = por %p137, %p138
      %p141 = scmp.ne.s32.totalorder %s126, %s140
      %p142 = scmp.eq.s32.totalorder %s18, 0
      %p143 = por %p141, %p142
      %s145 = sadd.s32 %s144, 1
      %p148 = scmp.eq.s32.totalorder %s12, 1
      %p149 = scmp.ne.s32.totalorder %s144, %s146
      %p150 = scmp.eq.s32.totalorder %s12, 0
      %p151 = por %p149, %p150
      %p152 = scmp.ne.s32.totalorder %s144, %s146
      %p153 = scmp.eq.s32.totalorder %s17, 1
      %p154 = por %p152, %p153
      %p155 = scmp.ne.s32.totalorder %s146, %s147
      %p156 = scmp.eq.s32.totalorder %s17, 0
      %p157 = por %p155, %p156
      %p158 = scmp.ne.s32.totalorder %s146, %s147
      %p159 = scmp.eq.s32.totalorder %s18, 1
      %p160 = por %p158, %p159
      %p162 = scmp.ne.s32.totalorder %s147, %s161
      %p163 = scmp.eq.s32.totalorder %s18, 0
      %p164 = por %p162, %p163
      %p165 = scmp.le.s32.totalorder 1, %s12
      %p166 = scmp.lt.s32.totalorder %s12, 3
      %p167 = pnand %p165, %p166
      %p168 = pneg %p167
      // Predicated region
      $region9: #{pointnet_encoder_forward.1} parent=5 // pred_check
        _
      $region10: #{pointnet_encoder_forward.1} parent=5 // pred_check_branch
        %170 = sbr.rel (%p167) target = $region12
      $region11: #{pointnet_encoder_forward.1} parent=5 // pred_region
        %s171 = ssub.s32 %s12, 1
        // Predicated region
        $region13: #{pointnet_encoder_forward.1} parent=11 // pred_check
          %p172 = pneg %p73
        $region14: #{pointnet_encoder_forward.1} parent=11 // pred_check_branch
          %174 = sbr.rel (%p172) target = $region16
        $region15: #{pointnet_encoder_forward.1} parent=11 // pred_region
          _
        $region16: #{pointnet_encoder_forward.1} parent=11 // pred_fallthru
          _
        // Predicated region
        $region17: #{pointnet_encoder_forward.1} parent=11 // pred_check
          %p175 = pneg %p94
        $region18: #{pointnet_encoder_forward.1} parent=11 // pred_check_branch
          %177 = sbr.rel (%p175) target = $region20
        $region19: #{pointnet_encoder_forward.1} parent=11 // pred_region
          _
        $region20: #{pointnet_encoder_forward.1} parent=11 // pred_fallthru
          _
        // Predicated region
        $region21: #{pointnet_encoder_forward.1} parent=11 // pred_check
          %p178 = pneg %p115
        $region22: #{pointnet_encoder_forward.1} parent=11 // pred_check_branch
          %180 = sbr.rel (%p178) target = $region24
        $region23: #{pointnet_encoder_forward.1} parent=11 // pred_region
          _
        $region24: #{pointnet_encoder_forward.1} parent=11 // pred_fallthru
          _
        // Predicated region
        $region25: #{pointnet_encoder_forward.1} parent=11 // pred_check
          %p181 = pneg %p136
        $region26: #{pointnet_encoder_forward.1} parent=11 // pred_check_branch
          %183 = sbr.rel (%p181) target = $region28
        $region27: #{pointnet_encoder_forward.1} parent=11 // pred_region
          _
        $region28: #{pointnet_encoder_forward.1} parent=11 // pred_fallthru
          _
      $region12: #{pointnet_encoder_forward.1} parent=5 // pred_fallthru
        _
      %p184 = scmp.lt.s32.totalorder %s12, 2
      // Predicated region
      $region29: #{pointnet_encoder_forward.1} parent=5 // pred_check
        %p185 = pneg %p184
      $region30: #{pointnet_encoder_forward.1} parent=5 // pred_check_branch
        %187 = sbr.rel (%p185) target = $region32
      $region31: #{pointnet_encoder_forward.1} parent=5 // pred_region
        // Predicated region
        $region33: #{pointnet_encoder_forward.1} parent=31 // pred_check
          %p188 = pneg %p46
        $region34: #{pointnet_encoder_forward.1} parent=31 // pred_check_branch
          %190 = sbr.rel (%p188) target = $region36
        $region35: #{pointnet_encoder_forward.1} parent=31 // pred_region
          %s191 = smul.u32 2, %s20
          %p192 = scmp.lt.s32.totalorder %s19, 1
          %s193 = scalar_select %p192, %s19, 1
          %p194 = scmp.lt.s32.totalorder %s191, 1
          %s195 = scalar_select %p194, %s191, 1
          %s196 = smul.addr %s193, 2
          %s197 = sadd.s32 %s195, %s196
          %s198 = smul.addr %s197, 4
          %s199 = scalar_lea.vmem %s0, %s198
          %s200 = smul.u32 2, %s20
        $region36: #{pointnet_encoder_forward.1} parent=31 // pred_fallthru
          _
      $region32: #{pointnet_encoder_forward.1} parent=5 // pred_fallthru
        _
      %p201 = scmp.le.s32.totalorder 1, %s12
      %p202 = scmp.lt.s32.totalorder %s12, 3
      %p203 = pnand %p201, %p202
      %p204 = pneg %p203
      // Predicated region
      $region37: #{pointnet_encoder_forward.1} parent=5 // pred_check
        _
      $region38: #{pointnet_encoder_forward.1} parent=5 // pred_check_branch
        %206 = sbr.rel (%p203) target = $region40
      $region39: #{pointnet_encoder_forward.1} parent=5 // pred_region
        %s207 = ssub.s32 %s12, 1
        %s208 = smul.u32 2, %s22
        %p209 = scmp.lt.s32.totalorder %s21, 1
        %s210 = scalar_select %p209, %s21, 1
        %p211 = scmp.lt.s32.totalorder %s208, 1
        %s212 = scalar_select %p211, %s208, 1
        %s213 = smul.addr %s210, 2
        %s214 = sadd.s32 %s212, %s213
        %s215 = smul.addr %s214, 4
        %s216 = scalar_lea.vmem %s0, %s215
        %p217 = pneg %p52
        %p218 = pneg %p49
        %p219 = pneg %p73
        %p220 = pneg %p70
        %p221 = pneg %p94
        %p222 = pneg %p91
        %p223 = pneg %p115
        %p224 = pneg %p112
        %p225 = pneg %p136
        %p226 = pneg %p133
        %p227 = pneg %p157
        %p228 = pneg %p154
        %s229 = smul.u32 2, %s22
        %p230 = scmp.lt.s32.totalorder %s21, 1
        %s231 = scalar_select %p230, %s21, 1
        %p232 = scmp.lt.s32.totalorder %s229, 1
        %s233 = scalar_select %p232, %s229, 1
        %s234 = smul.addr %s231, 2
        %s235 = sadd.s32 %s233, %s234
        %s236 = smul.addr %s235, 4
        %s237 = scalar_lea.vmem %s0, %s236
        %s238 = smul.u32 2, %s22
        %p239 = scmp.eq.s32.totalorder %s21, 0
        %p240 = scmp.eq.s32.totalorder %s22, 0
        %p241 = pnand %p239, %p240
        %p242 = pneg %p241
        // Predicated region
        $region41: #{pointnet_encoder_forward.1} parent=39 // pred_check
          _
        $region42: #{pointnet_encoder_forward.1} parent=39 // pred_check_branch
          %244 = sbr.rel (%p241) target = $region44
        $region43: #{pointnet_encoder_forward.1} parent=39 // pred_region
          %vm245 = vcmask 2048
          %246 = vst.msk [vmem:[#allocation2] sm:$0x7] %vm245, 0.0
          %247 = vst.msk [vmem:[#allocation3] sm:$0x7] %vm245, 0.0
          %vm248 = vcmask 18432
          %249 = vst.msk [vmem:[#allocation4] sm:$0x7] %vm248, 0.0
        $region44: #{pointnet_encoder_forward.1} parent=39 // pred_fallthru
          _
        %v250 = vld [vmem:[%s237] sm:$0x77]
        %v252 = vcombine.high %v250, %v250
        %vm254 = vcmask 1042432
        %v255 = vsel %vm254, %v250, 0.0
        %v256 = vsel %vm254, %v252, 0.0
        %v257 = vadd.f32 %v255, %v256
        %258 = vadd.xlane.f32.xlu0 %v257
        %v259 = vpop.xlane.xlu0 %258
        %v260 = vld [vmem:[#allocation2] sm:$0x7]
        %v261 = vadd.f32 %v260, %v259
        %vm262 = vcmask 2048
        %263 = vst.msk [vmem:[#allocation2] sm:$0x7] %vm262, %v261
        %v264 = vld [vmem:[#allocation4] sm:$0x7]
        %265 = vmatprep.subr.mxu0 %v252
        %266 = vmatpush1.xpose.msra.mxu0 %v250
        %267 = vmatprep.subr.mxu0 0.0
        %268 = vmatpush1.xpose.msra.mxu0 0.0
        %269 = vmatprep.subr.mxu0 0.0
        %270 = vmatpush1.xpose.msra.mxu0 0.0
        %271 = vmatprep.subr.mxu0 0.0
        %272 = vmatpush1.xpose.msra.mxu0 0.0
        %273 = vmatprep.subr.mxu0 0.0
        %274 = vmatpush1.xpose.msra.mxu0 0.0
        %275 = vmatprep.subr.mxu0 0.0
        %276 = vmatpush1.xpose.msra.mxu0 0.0
        %277 = vmatprep.subr.mxu0 0.0
        %278 = vmatpush1.xpose.msra.mxu0 0.0
        %279 = vmatprep.subr.mxu0 0.0
        %280 = vmatpush1.xpose.msra.mxu0 0.0
        %281 = vmatprep.subr.mxu0 0.0
        %282 = vmatpush1.xpose.msra.mxu0 0.0
        %283 = vmatprep.subr.mxu0 0.0
        %284 = vmatpush1.xpose.msra.mxu0 0.0
        %285 = vmatprep.subr.mxu0 0.0
        %286 = vmatpush1.xpose.msra.mxu0 0.0
        %287 = vmatprep.subr.mxu0 0.0
        %288 = vmatpush1.xpose.msra.mxu0 0.0
        %289 = vmatprep.subr.mxu0 0.0
        %290 = vmatpush1.xpose.msra.mxu0 0.0
        %291 = vmatprep.subr.mxu0 0.0
        %292 = vmatpush1.xpose.msra.mxu0 0.0
        %293 = vmatprep.subr.mxu0 0.0
        %294 = vmatpush1.xpose.msra.mxu0 0.0
        %295 = vmatprep.subr.mxu0 0.0
        %296 = vmatpush1.xpose.msra.mxu0 0.0
        %297 = vmatprep.subr.mxu0 0.0
        %298 = vmatpush1.xpose.msra.mxu0 0.0
        %299 = vmatprep.subr.mxu0 0.0
        %300 = vmatpush1.xpose.msra.mxu0 0.0
        %301 = vmatprep.subr.mxu0 0.0
        %302 = vmatpush1.xpose.msra.mxu0 0.0
        %303 = vmatprep.subr.mxu0 0.0
        %304 = vmatpush1.xpose.msra.mxu0 0.0
        %305 = vmatprep.subr.mxu0 0.0
        %306 = vmatpush1.xpose.msra.mxu0 0.0
        %307 = vmatprep.subr.mxu0 0.0
        %308 = vmatpush1.xpose.msra.mxu0 0.0
        %309 = vmatprep.subr.mxu0 0.0
        %310 = vmatpush1.xpose.msra.mxu0 0.0
        %311 = vmatprep.subr.mxu0 0.0
        %312 = vmatpush1.xpose.msra.mxu0 0.0
        %313 = vmatprep.subr.mxu0 0.0
        %314 = vmatpush1.xpose.msra.mxu0 0.0
        %315 = vmatprep.subr.mxu0 0.0
        %316 = vmatpush1.xpose.msra.mxu0 0.0
        %317 = vmatprep.subr.mxu0 0.0
        %318 = vmatpush1.xpose.msra.mxu0 0.0
        %319 = vmatprep.subr.mxu0 0.0
        %320 = vmatpush1.xpose.msra.mxu0 0.0
        %321 = vmatprep.subr.mxu0 0.0
        %322 = vmatpush1.xpose.msra.mxu0 0.0
        %323 = vmatprep.subr.mxu0 0.0
        %324 = vmatpush1.xpose.msra.mxu0 0.0
        %325 = vmatprep.subr.mxu0 0.0
        %326 = vmatpush1.xpose.msra.mxu0 0.0
        %327 = vmatprep.subr.mxu0 0.0
        %328 = vmatpush1.xpose.msra.mxu0 0.0
        %329 = vmatprep.mubr.f32.mxu0 %v252
        %330 = vmatmul.mubr.f32.gmra.mrb[0].mxu0 %v250
        %v331 = vpop.f32.mrb[0].mxu0
        %v332 = vadd.f32 0.0, %v331
        %v333 = vpop.f32.mrb[0].mxu0
        %334 = vdwg.mxu0
        %v335 = vadd.f32 %v264, %v332
        %vm336 = vcmask 18432
        %337 = vst.msk [vmem:[#allocation4] sm:$0x7] %vm336, %v335
        // Predicated region
        $region45: #{pointnet_encoder_forward.1} parent=39 // pred_check
          %p338 = pneg %p239
        $region46: #{pointnet_encoder_forward.1} parent=39 // pred_check_branch
          %340 = sbr.rel (%p338) target = $region48
        $region47: #{pointnet_encoder_forward.1} parent=39 // pred_region
          %v341 = vld [vmem:[#allocation3] sm:$0x7]
          %v342 = vadd.f32 %v341, %v259
          %343 = vst.msk [vmem:[#allocation3] sm:$0x7] %vm262, %v342
        $region48: #{pointnet_encoder_forward.1} parent=39 // pred_fallthru
          _
        %p344 = scmp.eq.s32.totalorder %s21, 1
        %p345 = pnand %p344, %p240
        %p346 = pneg %p345
        // Predicated region
        $region49: #{pointnet_encoder_forward.1} parent=39 // pred_check
          _
        $region50: #{pointnet_encoder_forward.1} parent=39 // pred_check_branch
          %348 = sbr.rel (%p345) target = $region52
        $region51: #{pointnet_encoder_forward.1} parent=39 // pred_region
          %v349 = vld [vmem:[%s1] sm:$0x77]
          %v350 = vld [vmem:[%s2] sm:$0x3]
          %v351 = vld [vmem:[#allocation2] sm:$0x7]
          %353 = vset.pattern.permute.xlu0 0
          %354 = vperm.xlu0 %353, %v351
          %v355 = vpop.permute.xlu0 %354
          %v358 = vcombine.high %v349, %v349
          %v360 = vmul.f32 %v355, %v349
          %v361 = vmul.f32 %v355, %v358
          %v362 = vsel %vm254, %v360, 0.0
          %v363 = vrot.slane %v362, 4
          %v364 = vadd.f32 %v362, %v363
          %v365 = vrot.slane %v364, 2
          %v366 = vadd.f32 %v364, %v365
          %v367 = vrot.slane %v366, 1
          %v368 = vadd.f32 %v366, %v367
          %v369 = vsel %vm254, %v361, 0.0
          %v370 = vrot.slane %v369, 4
          %v371 = vadd.f32 %v369, %v370
          %v372 = vrot.slane %v371, 2
          %v373 = vadd.f32 %v371, %v372
          %v374 = vrot.slane %v373, 1
          %v375 = vadd.f32 %v373, %v374
          %v376 = vld [vmem:[#allocation4] sm:$0x7]
          %vm377 = vcmask 23552
          %v379 = vsel %vm377, %v376, 0
          %v381 = vsel %vm254, %v349, 0
          %v383 = vsel %vm254, %v358, 0
          %385 = vmatprep.subr.mxu0 %v383
          %386 = vmatpush1.msra.mxu0 %v381
          %387 = vmatprep.subr.mxu0 0.0
          %388 = vmatpush1.msra.mxu0 0.0
          %389 = vmatprep.subr.mxu0 0.0
          %390 = vmatpush1.msra.mxu0 0.0
          %391 = vmatprep.subr.mxu0 0.0
          %392 = vmatpush1.msra.mxu0 0.0
          %393 = vmatprep.subr.mxu0 0.0
          %394 = vmatpush1.msra.mxu0 0.0
          %395 = vmatprep.subr.mxu0 0.0
          %396 = vmatpush1.msra.mxu0 0.0
          %397 = vmatprep.subr.mxu0 0.0
          %398 = vmatpush1.msra.mxu0 0.0
          %399 = vmatprep.subr.mxu0 0.0
          %400 = vmatpush1.msra.mxu0 0.0
          %401 = vmatprep.subr.mxu0 0.0
          %402 = vmatpush1.msra.mxu0 0.0
          %403 = vmatprep.subr.mxu0 0.0
          %404 = vmatpush1.msra.mxu0 0.0
          %405 = vmatprep.subr.mxu0 0.0
          %406 = vmatpush1.msra.mxu0 0.0
          %407 = vmatprep.subr.mxu0 0.0
          %408 = vmatpush1.msra.mxu0 0.0
          %409 = vmatprep.subr.mxu0 0.0
          %410 = vmatpush1.msra.mxu0 0.0
          %411 = vmatprep.subr.mxu0 0.0
          %412 = vmatpush1.msra.mxu0 0.0
          %413 = vmatprep.subr.mxu0 0.0
          %414 = vmatpush1.msra.mxu0 0.0
          %415 = vmatprep.subr.mxu0 0.0
          %416 = vmatpush1.msra.mxu0 0.0
          %417 = vmatprep.subr.mxu0 0.0
          %418 = vmatpush1.msra.mxu0 0.0
          %419 = vmatprep.subr.mxu0 0.0
          %420 = vmatpush1.msra.mxu0 0.0
          %421 = vmatprep.subr.mxu0 0.0
          %422 = vmatpush1.msra.mxu0 0.0
          %423 = vmatprep.subr.mxu0 0.0
          %424 = vmatpush1.msra.mxu0 0.0
          %425 = vmatprep.subr.mxu0 0.0
          %426 = vmatpush1.msra.mxu0 0.0
          %427 = vmatprep.subr.mxu0 0.0
          %428 = vmatpush1.msra.mxu0 0.0
          %429 = vmatprep.subr.mxu0 0.0
          %430 = vmatpush1.msra.mxu0 0.0
          %431 = vmatprep.subr.mxu0 0.0
          %432 = vmatpush1.msra.mxu0 0.0
          %433 = vmatprep.subr.mxu0 0.0
          %434 = vmatpush1.msra.mxu0 0.0
          %435 = vmatprep.subr.mxu0 0.0
          %436 = vmatpush1.msra.mxu0 0.0
          %437 = vmatprep.subr.mxu0 0.0
          %438 = vmatpush1.msra.mxu0 0.0
          %439 = vmatprep.subr.mxu0 0.0
          %440 = vmatpush1.msra.mxu0 0.0
          %441 = vmatprep.subr.mxu0 0.0
          %442 = vmatpush1.msra.mxu0 0.0
          %443 = vmatprep.subr.mxu0 0.0
          %444 = vmatpush1.msra.mxu0 0.0
          %445 = vmatprep.subr.mxu0 0.0
          %446 = vmatpush1.msra.mxu0 0.0
          %447 = vmatprep.subr.mxu0 0.0
          %448 = vmatpush1.msra.mxu0 0.0
          %449 = vmatprep.mubr.f32.mxu0 0.0
          %450 = vmatmul.mubr.f32.gmra.mrb[0].mxu0 %v379
          %v451 = vpop.f32.mrb[0].mxu0
          %v452 = vadd.f32 0.0, %v451
          %v453 = vpop.f32.mrb[0].mxu0
          %v454 = vadd.f32 0.0, %v453
          %455 = vdwg.mxu0
          %v458 = vcombine.low %v452, %v454
          %v460 = vmul.f32 %v349, %v458
          %v462 = vcombine.high %v460, %v460
          %v464 = vsel %vm254, %v460, 0.0
          %v465 = vrot.slane %v464, 4
          %v466 = vadd.f32 %v464, %v465
          %v467 = vrot.slane %v466, 2
          %v468 = vadd.f32 %v466, %v467
          %v469 = vrot.slane %v468, 1
          %v470 = vadd.f32 %v468, %v469
          %v471 = vsel %vm254, %v462, 0.0
          %v472 = vrot.slane %v471, 4
          %v473 = vadd.f32 %v471, %v472
          %v474 = vrot.slane %v473, 2
          %v475 = vadd.f32 %v473, %v474
          %v476 = vrot.slane %v475, 1
          %v477 = vadd.f32 %v475, %v476
          %v478 = vmul.f32 %v368, 0.001953125
          %v479 = vmul.f32 %v375, 0.001953125
          %v481 = vlaneseq
          %v482 = vshrl.u32 %v481, 7
          %v483 = vsub.s32 0, %v482
          %v484 = vrot.slane %v350, %v483
          %v485 = vlaneseq
          %v486 = vshrl.u32 %v485, 7
          %v487 = vsub.s32 1, %v486
          %v488 = vrot.slane %v350, %v487
          %v491 = vadd.f32 %v478, %v484
          %v492 = vadd.f32 %v479, %v488
          %v493 = vmul.f32 %v350, 2.0
          %v496 = vcombine.low %v368, %v375
          %v498 = vunpack.c.l.s4 1966171168
          %v499 = vunpack.c.0.s8 %v498
          %v500 = vlaneseq
          %v501 = vshrl.u32 %v500, 7
          %v502 = vsub.s32 %v499, %v501
          %v503 = vrot.slane %v496, %v502
          %v505 = vunpack.c.l.s4 1966171168
          %v506 = vunpack.c.0.s8 %v505
          %v507 = vlaneseq
          %v508 = vshrl.u32 %v507, 7
          %v509 = vsub.s32 %v506, %v508
          %v510 = vrot.slane %v503, %v509
          %v512 = vmul.f32 %v493, %v510
          %v514 = vlaneseq
          %v515 = vshrl.u32 %v514, 7
          %v516 = vsub.s32 0, %v515
          %v517 = vrot.slane %v512, %v516
          %v518 = vlaneseq
          %v519 = vshrl.u32 %v518, 7
          %v520 = vsub.s32 1, %v519
          %v521 = vrot.slane %v512, %v520
          %v524 = vadd.f32 %v470, %v517
          %v525 = vadd.f32 %v477, %v521
          %v526 = vmul.f32 %v350, 512.0
          %v527 = vmul.f32 %v526, %v350
          %v529 = vlaneseq
          %v530 = vshrl.u32 %v529, 7
          %v531 = vsub.s32 0, %v530
          %v532 = vrot.slane %v527, %v531
          %v533 = vlaneseq
          %v534 = vshrl.u32 %v533, 7
          %v535 = vsub.s32 1, %v534
          %v536 = vrot.slane %v527, %v535
          %v539 = vadd.f32 %v524, %v532
          %v540 = vadd.f32 %v525, %v536
          %v541 = vmul.f32 %v539, 0.001953125
          %v542 = vmul.f32 %v540, 0.001953125
          %v543 = vmul.f32 %v491, %v491
          %v544 = vmul.f32 %v492, %v492
          %v545 = vsub.f32 %v541, %v543
          %v546 = vsub.f32 %v542, %v544
          %v547 = vmax.f32 %v545, 0.0
          %v548 = vmax.f32 %v546, 0.0
          %v549 = vadd.f32 %v547, 1e-05
          %v550 = vadd.f32 %v548, 1e-05
          %v551 = vrsqrt.pop %v549
          %v552 = vrsqrt.pop %v550
          %v553 = vld [vmem:[#allocation3] sm:$0x7]
          %555 = vset.pattern.permute.xlu0 0
          %556 = vperm.xlu0 %555, %v553
          %v557 = vpop.permute.xlu0 %556
          %v559 = vmul.f32 %v557, %v349
          %v560 = vmul.f32 %v557, %v358
          %v561 = vsel %vm254, %v559, 0.0
          %v562 = vrot.slane %v561, 4
          %v563 = vadd.f32 %v561, %v562
          %v564 = vrot.slane %v563, 2
          %v565 = vadd.f32 %v563, %v564
          %v566 = vrot.slane %v565, 1
          %v567 = vadd.f32 %v565, %v566
          %v568 = vsel %vm254, %v560, 0.0
          %v569 = vrot.slane %v568, 4
          %v570 = vadd.f32 %v568, %v569
          %v571 = vrot.slane %v570, 2
          %v572 = vadd.f32 %v570, %v571
          %v573 = vrot.slane %v572, 1
          %v574 = vadd.f32 %v572, %v573
          %v575 = vmul.f32 %v567, 0.00390625
          %v576 = vmul.f32 %v574, 0.00390625
          %v577 = vadd.f32 %v575, %v484
          %v578 = vadd.f32 %v576, %v488
          %v579 = vsub.f32 %v577, %v491
          %v580 = vsub.f32 %v578, %v492
          %v581 = vmul.f32 %v579, %v551
          %v582 = vmul.f32 %v580, %v552
          %v583 = vld [vmem:[%s3] sm:$0x3]
          %v585 = vlaneseq
          %v586 = vshrl.u32 %v585, 7
          %v587 = vsub.s32 0, %v586
          %v588 = vrot.slane %v583, %v587
          %v589 = vlaneseq
          %v590 = vshrl.u32 %v589, 7
          %v591 = vsub.s32 1, %v590
          %v592 = vrot.slane %v583, %v591
          %v595 = vmul.f32 %v581, %v588
          %v596 = vmul.f32 %v582, %v592
          %v597 = vld [vmem:[%s4] sm:$0x3]
          %v599 = vlaneseq
          %v600 = vshrl.u32 %v599, 7
          %v601 = vsub.s32 0, %v600
          %v602 = vrot.slane %v597, %v601
          %v603 = vlaneseq
          %v604 = vshrl.u32 %v603, 7
          %v605 = vsub.s32 1, %v604
          %v606 = vrot.slane %v597, %v605
          %v609 = vadd.f32 %v595, %v602
          %v610 = vadd.f32 %v596, %v606
          %v613 = vcombine.low %v609, %v610
          %v615 = vunpack.c.l.s4 1966171168
          %v616 = vunpack.c.0.s8 %v615
          %v617 = vlaneseq
          %v618 = vshrl.u32 %v617, 7
          %v619 = vsub.s32 %v616, %v618
          %v620 = vrot.slane %v613, %v619
          %v622 = vunpack.c.l.s4 1966171168
          %v623 = vunpack.c.0.s8 %v622
          %v624 = vlaneseq
          %v625 = vshrl.u32 %v624, 7
          %v626 = vsub.s32 %v623, %v625
          %v627 = vrot.slane %v620, %v626
          %v629 = vlaneseq
          %vm630 = vcmp.ge.s32.totalorder %v629, 0
          %vm631 = vcmp.lt.s32.totalorder %v629, 256
          %vm632 = vmand %vm630, %vm631
          %633 = vst.msk [vmem:[#allocation5] sm:$0x3] %vm632, %v627
        $region52: #{pointnet_encoder_forward.1} parent=39 // pred_fallthru
          _
        // Predicated region
        $region53: #{pointnet_encoder_forward.1} parent=39 // pred_check
          %p634 = pneg %p154
        $region54: #{pointnet_encoder_forward.1} parent=39 // pred_check_branch
          %636 = sbr.rel (%p634) target = $region56
        $region55: #{pointnet_encoder_forward.1} parent=39 // pred_region
          %s638 = ssub.s32 32, 32
          %639 = vsyncadd [#allocation6], %s638
          %s641 = sshll.u32 [#allocation5], 4
          %s642 = int_to_ptr.vmem [resolvable:$true] %s641
          %644 = dma.vmem_to_hbm [thread:$0]  %s642, 32, %s5, [#allocation6]
        $region56: #{pointnet_encoder_forward.1} parent=39 // pred_fallthru
          _
        // Predicated region
        $region57: #{pointnet_encoder_forward.1} parent=39 // pred_check
          %p645 = pneg %p154
        $region58: #{pointnet_encoder_forward.1} parent=39 // pred_check_branch
          %647 = sbr.rel (%p645) target = $region60
        $region59: #{pointnet_encoder_forward.1} parent=39 // pred_region
          %648 = dma.done [#allocation6], 32
        $region60: #{pointnet_encoder_forward.1} parent=39 // pred_fallthru
          _
      $region40: #{pointnet_encoder_forward.1} parent=5 // pred_fallthru
        _
      %p649 = scmp.le.s32.totalorder 2, %s12
      // Predicated region
      $region61: #{pointnet_encoder_forward.1} parent=5 // pred_check
        %p650 = pneg %p649
      $region62: #{pointnet_encoder_forward.1} parent=5 // pred_check_branch
        %652 = sbr.rel (%p650) target = $region64
      $region63: #{pointnet_encoder_forward.1} parent=5 // pred_region
        %s653 = ssub.s32 %s12, 2
      $region64: #{pointnet_encoder_forward.1} parent=5 // pred_fallthru
        _
    $region6: #{pointnet_encoder_forward.1} parent=1 // loop_footer
      %s16 = sadd.s32 1, %s12
    $region7: #{pointnet_encoder_forward.1} parent=1 // loop_footer_branch
      %11 = sbr.rel target = $region3
    $region8: #{pointnet_encoder_forward.1} parent=1 // loop_exit
      _
    %654 = vsyncpa [#allocation6], 1
    %s655 = scalar_lea.sflag [#allocation6], 1
    %656 = vsyncpa %s655, 1

</llo_original>
